<compile_context>
chip_gen: v7x
topology: tpu7x:2x2x1
jax: 0.10.0
libtpu: 0.0.40
codegen_flags: <defaults>
</compile_context>

<pallas_src>
import jax
import jax.numpy as jnp
from jax.experimental import pallas as pl
from jax.experimental.pallas import tpu as pltpu


def _round_up(x: int, m: int) -> int:
    return ((x + m - 1) // m) * m


# ----------------------------------------------------------------------------- 
# Kernels: weights resident in VMEM (constant-index BlockSpecs)
# -----------------------------------------------------------------------------
def _lrcn_fused_kernel(x_ref, u_ref, b_ref, o_ref):
    """Collapsed path: one (TB, Dp) @ (Dp, Dp) matmul per layer, U_l = V_l^T @ W_l^T."""
    x0 = x_ref[...].astype(jnp.float32)          # load tile once (hoisted out of layer loop)
    x_l = x0
    for layer in range(u_ref.shape[0]):          # static unroll (L is compile-time)
        x_l_w = jnp.dot(x_l.astype(u_ref.dtype), u_ref[layer],
                        preferred_element_type=jnp.float32)           # (TB, Dp), f32 acc
        x_l = x0 * (x_l_w + b_ref[layer]) + x_l  # elementwise fuse stays in f32
    o_ref[...] = x_l.astype(o_ref.dtype)


def _lrcn_lowrank_kernel(x_ref, vt_ref, wt_ref, b_ref, o_ref):
    """Two-matmul path for large D: rank axis zero-padded to a lane-dense 128 multiple."""
    x0 = x_ref[...].astype(jnp.float32)
    x_l = x0
    for layer in range(vt_ref.shape[0]):
        x_l_v = jnp.dot(x_l.astype(vt_ref.dtype), vt_ref[layer],
                        preferred_element_type=jnp.float32)           # (TB, Rp)
        x_l_w = jnp.dot(x_l_v.astype(wt_ref.dtype), wt_ref[layer],
                        preferred_element_type=jnp.float32)           # (TB, Dp)
        x_l = x0 * (x_l_w + b_ref[layer]) + x_l
    o_ref[...] = x_l.astype(o_ref.dtype)


# ----------------------------------------------------------------------------- 
# Kernels: weights streamed from HBM layer-by-layer (manual double buffering).
# Used when the full resident weight stack does not fit the VMEM budget.
# -----------------------------------------------------------------------------
def _lrcn_fused_stream_kernel(x_ref, u_hbm, b_ref, o_ref, u_buf, sem):
    num_layers = b_ref.shape[0]

    def fetch(layer, slot):
        pltpu.make_async_copy(u_hbm.at[layer], u_buf.at[slot], sem.at[slot]).start()

    fetch(0, 0)                                   # prime layer 0
    x0 = x_ref[...].astype(jnp.float32)
    x_l = x0
    for layer in range(num_layers):
        slot = layer & 1
        pltpu.make_async_copy(u_hbm.at[layer], u_buf.at[slot], sem.at[slot]).wait()
        if layer + 1 < num_layers:                # prefetch next layer behind the MXU
            fetch(layer + 1, 1 - slot)
        x_l_w = jnp.dot(x_l.astype(u_buf.dtype), u_buf[slot],
                        preferred_element_type=jnp.float32)
        x_l = x0 * (x_l_w + b_ref[layer]) + x_l
    o_ref[...] = x_l.astype(o_ref.dtype)


def _lrcn_lowrank_stream_kernel(x_ref, vt_hbm, wt_hbm, b_ref, o_ref,
                                vt_buf, wt_buf, sem):
    num_layers = b_ref.shape[0]

    def fetch(layer, slot):
        pltpu.make_async_copy(vt_hbm.at[layer], vt_buf.at[slot], sem.at[0, slot]).start()
        pltpu.make_async_copy(wt_hbm.at[layer], wt_buf.at[slot], sem.at[1, slot]).start()

    fetch(0, 0)
    x0 = x_ref[...].astype(jnp.float32)
    x_l = x0
    for layer in range(num_layers):
        slot = layer & 1
        pltpu.make_async_copy(vt_hbm.at[layer], vt_buf.at[slot], sem.at[0, slot]).wait()
        pltpu.make_async_copy(wt_hbm.at[layer], wt_buf.at[slot], sem.at[1, slot]).wait()
        if layer + 1 < num_layers:
            fetch(layer + 1, 1 - slot)
        x_l_v = jnp.dot(x_l.astype(vt_buf.dtype), vt_buf[slot],
                        preferred_element_type=jnp.float32)
        x_l_w = jnp.dot(x_l_v.astype(wt_buf.dtype), wt_buf[slot],
                        preferred_element_type=jnp.float32)
        x_l = x0 * (x_l_w + b_ref[layer]) + x_l
    o_ref[...] = x_l.astype(o_ref.dtype)


# ----------------------------------------------------------------------------- 
# Generation-aware policy
# -----------------------------------------------------------------------------
def _tpu_profile():
    """Returns (vmem_budget_bytes, tensorcores_per_chip, mxu_width)."""
    vmem_cap, n_tc, mxu = 128 * 2 ** 20, 1, 256
    try:
        kind = (jax.devices()[0].device_kind or "").lower()
    except Exception:
        kind = ""
    if "v5e" in kind or "v5 lite" in kind or "v5litepod" in kind:
        vmem_cap, n_tc, mxu = 128 * 2 ** 20, 1, 128     # v5e
    elif "v6" in kind:
        vmem_cap, n_tc, mxu = 128 * 2 ** 20, 1, 256     # v6e
    elif "v7" in kind or "tpu7" in kind:
        vmem_cap, n_tc, mxu = 64 * 2 ** 20, 2, 256      # v7x: 64 MiB / 2 TCs per chip
    else:
        # v2/v3/v4/v5p/unknown: conservative MXU width, assume megacore possible.
        vmem_cap, n_tc, mxu = 128 * 2 ** 20, 2, 128
    try:  # refine VMEM capacity if the query is available in this jax version
        info = pltpu.get_tpu_info()
        vmem_cap = int(getattr(info, "vmem_capacity_bytes", vmem_cap))
    except Exception:
        pass
    vmem_cap = max(32 * 2 ** 20, min(vmem_cap, 128 * 2 ** 20))
    # Never request the whole physical VMEM: leave Mosaic internal-scratch headroom.
    budget = vmem_cap - max(8 * 2 ** 20, vmem_cap // 8)
    return budget, n_tc, mxu


# ----------------------------------------------------------------------------- 
# Wrapper
# -----------------------------------------------------------------------------
def low_rank_cross_net(x, w_all, v_all, b_all, *, block_b=None, fuse_dd=None,
                       compute_dtype=jnp.bfloat16, stream_weights=None):
    """LowRankCrossNet forward.

    x:     (B, D)     float32
    w_all: (L, D, R)  stacked W_kernels (torch layout: (in_features, low_rank))
    v_all: (L, R, D)  stacked V_kernels (torch layout: (low_rank, in_features))
    b_all: (L, D)     stacked biases
    """
    B, D = x.shape
    L, _, R = w_all.shape
    out_dtype = x.dtype

    vmem_budget, n_tc, mxu = _tpu_profile()

    # Pad to TPU-friendly sizes (lane dim -> multiple of 128). Zero padding is exact
    # for this recurrence: padded rows/cols stay identically zero.
    Dp = _round_up(D, 128)
    Rp = _round_up(R, 128)

    if fuse_dd is None:
        if mxu <= 128:
            # v5e: the Rp=128 low-rank matmuls already fill the 128-wide MXU, so
            # collapsing only pays off while Dp <= 2*max(Rp, 128).
            fuse_dd = Dp <= 2 * max(Rp, 128)
        else:
            # v6e/v7x: N=Rp / K=Rp matmuls run at half rate on the 256-wide MXU.
            fuse_dd = (Dp <= 512) or (Dp <= 2 * Rp)

    itemsize = jnp.dtype(compute_dtype).itemsize
    if fuse_dd:
        slab_bytes = Dp * Dp * itemsize            # one layer's U slab
    else:
        slab_bytes = 2 * Dp * Rp * itemsize        # one layer's V^T and W^T slabs
    w_res_bytes = L * slab_bytes                   # resident weights, single-buffered
    bias_bytes = L * Dp * 4

    if stream_weights is None:
        # Explicit branch (not a silent clamp): stream layer slabs when the resident
        # stack would eat more than half the VMEM budget.
        stream_weights = w_res_bytes > vmem_budget // 2

    nonio_bytes = (2 * slab_bytes if stream_weights else w_res_bytes) + 2 * bias_bytes

    # --- batch tile policy ----------------------------------------------------
    B8 = _round_up(B, 8)
    if block_b is None:
        per_row = 28 * Dp                          # x/out double-buffered f32 + f32 working tiles
        avail = int(0.85 * vmem_budget) - nonio_bytes
        bb = max(8, (avail // max(per_row, 1)) // 8 * 8)
        bb = int(min(bb, 1024, B8))                # single-TC: biggest tile that fits (grid of 1 ok)
        if n_tc >= 2 and B8 >= 16:
            # dual-TC (v7x): keep >= 2 grid steps so "parallel" shards across cores.
            bb = min(bb, _round_up(-(-B8 // 2), 8))
        block_b = bb
    block_b = max(8, _round_up(int(block_b), 8))
    Bp = _round_up(B, block_b)
    grid = (Bp // block_b,)

    # --- operand prep -----------------------------------------------------------
    vt = jnp.transpose(v_all, (0, 2, 1)).astype(jnp.float32)  # (L, D, R): x @ vt == F.linear(x, V)
    wt = jnp.transpose(w_all, (0, 2, 1)).astype(jnp.float32)  # (L, R, D): xv @ wt == F.linear(xv, W)
    x_p = jnp.pad(x, ((0, Bp - B), (0, Dp - D)))
    b_p = jnp.pad(b_all.astype(jnp.float32), ((0, 0), (0, Dp - D))).reshape(L, 1, Dp)

    if fuse_dd:
        # Pure associativity: (x @ V^T) @ W^T == x @ (V^T @ W^T). Precompute in f32,
        # feed bf16 to the MXU. (Cache this when weights are static / jit the wrapper.)
        u = jnp.einsum("ldr,lre->lde", vt, wt)                             # (L, D, D) f32
        u = jnp.pad(u, ((0, 0), (0, Dp - D), (0, Dp - D))).astype(compute_dtype)
        weight_args = (u,)
        weight_block_shapes = [(L, Dp, Dp)]
        stream_scratch = [pltpu.VMEM((2, Dp, Dp), compute_dtype),
                          pltpu.SemaphoreType.DMA((2,))]
        kernel_resident, kernel_stream = _lrcn_fused_kernel, _lrcn_fused_stream_kernel
    else:
        vt_p = jnp.pad(vt, ((0, 0), (0, Dp - D), (0, Rp - R))).astype(compute_dtype)
        wt_p = jnp.pad(wt, ((0, 0), (0, Rp - R), (0, Dp - D))).astype(compute_dtype)
        weight_args = (vt_p, wt_p)
        weight_block_shapes = [(L, Dp, Rp), (L, Rp, Dp)]
        stream_scratch = [pltpu.VMEM((2, Dp, Rp), compute_dtype),
                          pltpu.VMEM((2, Rp, Dp), compute_dtype),
                          pltpu.SemaphoreType.DMA((2, 2))]
        kernel_resident, kernel_stream = _lrcn_lowrank_kernel, _lrcn_lowrank_stream_kernel

    x_spec = pl.BlockSpec((block_b, Dp), lambda i: (i, 0))
    o_spec = pl.BlockSpec((block_b, Dp), lambda i: (i, 0))
    io_bytes = 2 * 2 * block_b * Dp * 4 + 3 * block_b * Dp * 4

    def build_and_call(single_buffer: bool):
        # Constant-index specs: single-buffer them (the second pipeline buffer is waste).
        extra = {"pipeline_mode": pl.Buffered(1)} if single_buffer else {}
        b_spec = pl.BlockSpec((L, 1, Dp), lambda i: (0, 0, 0), **extra)
        if stream_weights:
            w_specs = [pl.BlockSpec(memory_space=pl.ANY) for _ in weight_args]
            scratch = stream_scratch
            kernel = kernel_stream
            w_bytes = 2 * slab_bytes               # two layer slabs in flight
        else:
            w_specs = [pl.BlockSpec(shape, lambda i: (0, 0, 0), **extra)
                       for shape in weight_block_shapes]
            scratch = []
            kernel = kernel_resident
            w_bytes = (1 if single_buffer else 2) * w_res_bytes
        est = w_bytes + (1 if single_buffer else 2) * bias_bytes + io_bytes
        vmem_limit = int(min(vmem_budget, max(32 * 2 ** 20, 1.25 * est)))
        return pl.pallas_call(
            kernel,
            out_shape=jax.ShapeDtypeStruct((Bp, Dp), out_dtype),
            grid_spec=pltpu.PrefetchScalarGridSpec(
                num_scalar_prefetch=0,
                grid=grid,
                in_specs=[x_spec, *w_specs, b_spec],
                out_specs=o_spec,
                scratch_shapes=scratch,
            ),
            compiler_params=pltpu.CompilerParams(
                dimension_semantics=("parallel",),
                vmem_limit_bytes=vmem_limit,
            ),
        )(x_p, *weight_args, b_p)

    try:
        out_p = build_and_call(True)
    except Exception:
        # pipeline_mode=pl.Buffered(1) not supported by this jax version: fall back to
        # the default double-buffered constant-index specs (identical semantics).
        out_p = build_and_call(False)

    return out_p[:B, :D]


# ----------------------------------------------------------------------------- 
# Init / reference / test
# -----------------------------------------------------------------------------
def init_params(key, in_features, num_layers, low_rank):
    """Xavier-normal init matching torch.nn.init.xavier_normal_ (bias = zeros)."""
    std = (2.0 / (in_features + low_rank)) ** 0.5
    kw, kv = jax.random.split(key)
    w_all = std * jax.random.normal(kw, (num_layers, in_features, low_rank), jnp.float32)
    v_all = std * jax.random.normal(kv, (num_layers, low_rank, in_features), jnp.float32)
    b_all = jnp.zeros((num_layers, in_features), jnp.float32)
    return w_all, v_all, b_all


def reference(x, w_all, v_all, b_all):
    """Pure-JAX f32 reference of LowRankCrossNet.forward."""
    x0 = x
    x_l = x0
    for layer in range(w_all.shape[0]):
        x_l_v = x_l @ v_all[layer].T          # F.linear(x_l, V)
        x_l_w = x_l_v @ w_all[layer].T        # F.linear(x_l_v, W)
        x_l = x0 * (x_l_w + b_all[layer]) + x_l
    return x_l


def _max_rel_err(a, b):
    return float(jnp.max(jnp.abs(a - b)) / (jnp.max(jnp.abs(b)) + 1e-6))


if __name__ == "__main__":
    # small shapes consistent with the module: (batch, in_features), low rank
    batch, in_features, num_layers, low_rank = 32, 32, 3, 4

    key = jax.random.PRNGKey(0)
    kx, kp = jax.random.split(key)
    x = jax.random.normal(kx, (batch, in_features), jnp.float32)
    w_all, v_all, b_all = init_params(kp, in_features, num_layers, low_rank)

    ref = reference(x, w_all, v_all, b_all)

    # 1) Default path: generation-aware tile policy, resident weights, bf16 MXU feed.
    out = jax.block_until_ready(low_rank_cross_net(x, w_all, v_all, b_all))
    assert out.shape == (batch, in_features)
    assert _max_rel_err(out, ref) < 3e-2, "default path mismatch vs reference"

    # 2) Explicit two-matmul low-rank path (R zero-padded to 128), bf16 MXU feed.
    out_lr = jax.block_until_ready(
        low_rank_cross_net(x, w_all, v_all, b_all, fuse_dd=False))
    assert _max_rel_err(out_lr, ref) < 3e-2, "low-rank path mismatch vs reference"

    # 3) f32 low-rank path matches the f32 reference tightly (parity-sensitive option).
    out_f32 = jax.block_until_ready(
        low_rank_cross_net(x, w_all, v_all, b_all, fuse_dd=False,
                           compute_dtype=jnp.float32))
    assert jnp.allclose(out_f32, ref, atol=1e-4, rtol=1e-4), "f32 path mismatch vs reference"

    # 4) Forced layer-streaming fused path (manual double-buffered weight DMA).
    out_st = jax.block_until_ready(
        low_rank_cross_net(x, w_all, v_all, b_all, fuse_dd=True, stream_weights=True))
    assert _max_rel_err(out_st, ref) < 3e-2, "streaming fused path mismatch vs reference"

    # 5) Forced layer-streaming low-rank path in f32 (tight check of the stream kernel).
    out_st_lr = jax.block_until_ready(
        low_rank_cross_net(x, w_all, v_all, b_all, fuse_dd=False,
                           stream_weights=True, compute_dtype=jnp.float32))
    assert jnp.allclose(out_st_lr, ref, atol=1e-4, rtol=1e-4), \
        "streaming low-rank path mismatch vs reference"

    print("KERNEL_OK")
</pallas_src>

<mosaic_0001>
module attributes {stable_mosaic.version = 11 : i64} {
  func.func @_lrcn_fused_kernel(%arg0: i32, %arg1: memref<16x128xf32, #tpu.memory_space<vmem>>, %arg2: memref<3x128x128xbf16, #tpu.memory_space<vmem>>, %arg3: memref<3x1x128xf32, #tpu.memory_space<vmem>>, %arg4: memref<16x128xf32, #tpu.memory_space<vmem>>) attributes {dimension_semantics = [#tpu.dimension_semantics<parallel>], iteration_bounds = array<i64: 2>, scalar_prefetch = 0 : i64, scratch_operands = 0 : i64, tpu.core_type = #tpu.core_type<tc>, window_params = [{transform_indices = @transform_0, window_bounds = array<i64: 16, 128>}, {pipeline_mode = #tpu.pipeline_mode<synchronous>, transform_indices = @transform_1, window_bounds = array<i64: 3, 128, 128>}, {pipeline_mode = #tpu.pipeline_mode<synchronous>, transform_indices = @transform_2, window_bounds = array<i64: 3, 1, 128>}, {transform_indices = @transform_3, window_bounds = array<i64: 16, 128>}]} {
    %c0 = arith.constant 0 : index
    %c0_0 = arith.constant 0 : index
    %0 = vector.load %arg1[%c0, %c0_0] : memref<16x128xf32, #tpu.memory_space<vmem>>, vector<16x128xf32>
    %1 = arith.truncf %0 : vector<16x128xf32> to vector<16x128xbf16>
    %c0_1 = arith.constant 0 : index
    %c0_2 = arith.constant 0 : index
    %c0_3 = arith.constant 0 : index
    %2 = vector.load %arg2[%c0_1, %c0_2, %c0_3] : memref<3x128x128xbf16, #tpu.memory_space<vmem>>, vector<1x128x128xbf16>
    %3 = vector.shape_cast %2 : vector<1x128x128xbf16> to vector<128x128xbf16>
    %cst = arith.constant dense<0.000000e+00> : vector<16x128xf32>
    %4 = tpu.matmul %1, %3, %cst {dimension_numbers = #tpu.dot_dimension_numbers<[1], [0], [0], [1], [0, 0, 1, 1], [], []>} : vector<16x128xbf16>, vector<128x128xbf16>, vector<16x128xf32> -> vector<16x128xf32>
    %c0_4 = arith.constant 0 : index
    %c0_5 = arith.constant 0 : index
    %c0_6 = arith.constant 0 : index
    %5 = vector.load %arg3[%c0_4, %c0_5, %c0_6] : memref<3x1x128xf32, #tpu.memory_space<vmem>>, vector<1x1x128xf32>
    %6 = vector.shape_cast %5 : vector<1x1x128xf32> to vector<1x128xf32>
    %7 = vector.broadcast %6 : vector<1x128xf32> to vector<16x128xf32>
    %8 = arith.addf %4, %7 : vector<16x128xf32>
    %9 = arith.mulf %0, %8 : vector<16x128xf32>
    %10 = arith.addf %9, %0 : vector<16x128xf32>
    %11 = arith.truncf %10 : vector<16x128xf32> to vector<16x128xbf16>
    %c1 = arith.constant 1 : index
    %c0_7 = arith.constant 0 : index
    %c0_8 = arith.constant 0 : index
    %12 = vector.load %arg2[%c1, %c0_7, %c0_8] : memref<3x128x128xbf16, #tpu.memory_space<vmem>>, vector<1x128x128xbf16>
    %13 = vector.shape_cast %12 : vector<1x128x128xbf16> to vector<128x128xbf16>
    %cst_9 = arith.constant dense<0.000000e+00> : vector<16x128xf32>
    %14 = tpu.matmul %11, %13, %cst_9 {dimension_numbers = #tpu.dot_dimension_numbers<[1], [0], [0], [1], [0, 0, 1, 1], [], []>} : vector<16x128xbf16>, vector<128x128xbf16>, vector<16x128xf32> -> vector<16x128xf32>
    %c1_10 = arith.constant 1 : index
    %c0_11 = arith.constant 0 : index
    %c0_12 = arith.constant 0 : index
    %15 = vector.load %arg3[%c1_10, %c0_11, %c0_12] : memref<3x1x128xf32, #tpu.memory_space<vmem>>, vector<1x1x128xf32>
    %16 = vector.shape_cast %15 : vector<1x1x128xf32> to vector<1x128xf32>
    %17 = vector.broadcast %16 : vector<1x128xf32> to vector<16x128xf32>
    %18 = arith.addf %14, %17 : vector<16x128xf32>
    %19 = arith.mulf %0, %18 : vector<16x128xf32>
    %20 = arith.addf %19, %10 : vector<16x128xf32>
    %21 = arith.truncf %20 : vector<16x128xf32> to vector<16x128xbf16>
    %c2 = arith.constant 2 : index
    %c0_13 = arith.constant 0 : index
    %c0_14 = arith.constant 0 : index
    %22 = vector.load %arg2[%c2, %c0_13, %c0_14] : memref<3x128x128xbf16, #tpu.memory_space<vmem>>, vector<1x128x128xbf16>
    %23 = vector.shape_cast %22 : vector<1x128x128xbf16> to vector<128x128xbf16>
    %cst_15 = arith.constant dense<0.000000e+00> : vector<16x128xf32>
    %24 = tpu.matmul %21, %23, %cst_15 {dimension_numbers = #tpu.dot_dimension_numbers<[1], [0], [0], [1], [0, 0, 1, 1], [], []>} : vector<16x128xbf16>, vector<128x128xbf16>, vector<16x128xf32> -> vector<16x128xf32>
    %c2_16 = arith.constant 2 : index
    %c0_17 = arith.constant 0 : index
    %c0_18 = arith.constant 0 : index
    %25 = vector.load %arg3[%c2_16, %c0_17, %c0_18] : memref<3x1x128xf32, #tpu.memory_space<vmem>>, vector<1x1x128xf32>
    %26 = vector.shape_cast %25 : vector<1x1x128xf32> to vector<1x128xf32>
    %27 = vector.broadcast %26 : vector<1x128xf32> to vector<16x128xf32>
    %28 = arith.addf %24, %27 : vector<16x128xf32>
    %29 = arith.mulf %0, %28 : vector<16x128xf32>
    %30 = arith.addf %29, %20 : vector<16x128xf32>
    %c0_19 = arith.constant 0 : index
    %c0_20 = arith.constant 0 : index
    %31 = vector.load %arg4[%c0_19, %c0_20] : memref<16x128xf32, #tpu.memory_space<vmem>>, vector<16x128xf32>
    tpu.vector_store %arg4[%c0_19, %c0_20], %30 {strides = array<i32>} : memref<16x128xf32, #tpu.memory_space<vmem>>, vector<16x128xf32>,
    return
  }
  func.func @transform_0(%arg0: i32) -> (i32, i32) {
    %c0_i32 = arith.constant 0 : i32
    %c0_i32_0 = arith.constant 0 : i32
    return %arg0, %c0_i32 : i32, i32
  }
  func.func @transform_1(%arg0: i32) -> (i32, i32, i32) {
    %c0_i32 = arith.constant 0 : i32
    %c0_i32_0 = arith.constant 0 : i32
    %c0_i32_1 = arith.constant 0 : i32
    %c0_i32_2 = arith.constant 0 : i32
    return %c0_i32, %c0_i32_0, %c0_i32_1 : i32, i32, i32
  }
  func.func @transform_2(%arg0: i32) -> (i32, i32, i32) {
    %c0_i32 = arith.constant 0 : i32
    %c0_i32_0 = arith.constant 0 : i32
    %c0_i32_1 = arith.constant 0 : i32
    %c0_i32_2 = arith.constant 0 : i32
    return %c0_i32, %c0_i32_0, %c0_i32_1 : i32, i32, i32
  }
  func.func @transform_3(%arg0: i32) -> (i32, i32) {
    %c0_i32 = arith.constant 0 : i32
    %c0_i32_0 = arith.constant 0 : i32
    return %arg0, %c0_i32 : i32, i32
  }
}

module attributes {stable_mosaic.version = 11 : i64} {
  func.func @_lrcn_fused_kernel(%arg0: i32, %arg1: memref<16x128xf32, #tpu.memory_space<vmem>>, %arg2: memref<3x128x128xbf16, #tpu.memory_space<vmem>>, %arg3: memref<3x1x128xf32, #tpu.memory_space<vmem>>, %arg4: memref<16x128xf32, #tpu.memory_space<vmem>>) attributes {dimension_semantics = [#tpu.dimension_semantics<parallel>], iteration_bounds = array<i64: 2>, scalar_prefetch = 0 : i64, scratch_operands = 0 : i64, tpu.core_type = #tpu.core_type<tc>, window_params = [{transform_indices = @transform_0, window_bounds = array<i64: 16, 128>}, {pipeline_mode = #tpu.pipeline_mode<synchronous>, transform_indices = @transform_1, window_bounds = array<i64: 3, 128, 128>}, {pipeline_mode = #tpu.pipeline_mode<synchronous>, transform_indices = @transform_2, window_bounds = array<i64: 3, 1, 128>}, {transform_indices = @transform_3, window_bounds = array<i64: 16, 128>}]} {
    %c0 = arith.constant 0 : index
    %c0_0 = arith.constant 0 : index
    %0 = vector.load %arg1[%c0, %c0_0] : memref<16x128xf32, #tpu.memory_space<vmem>>, vector<16x128xf32>
    %1 = arith.truncf %0 : vector<16x128xf32> to vector<16x128xbf16>
    %c0_1 = arith.constant 0 : index
    %c0_2 = arith.constant 0 : index
    %c0_3 = arith.constant 0 : index
    %2 = vector.load %arg2[%c0_1, %c0_2, %c0_3] : memref<3x128x128xbf16, #tpu.memory_space<vmem>>, vector<1x128x128xbf16>
    %3 = vector.shape_cast %2 : vector<1x128x128xbf16> to vector<128x128xbf16>
    %cst = arith.constant dense<0.000000e+00> : vector<16x128xf32>
    %4 = tpu.matmul %1, %3, %cst {dimension_numbers = #tpu.dot_dimension_numbers<[1], [0], [0], [1], [0, 0, 1, 1], [], []>} : vector<16x128xbf16>, vector<128x128xbf16>, vector<16x128xf32> -> vector<16x128xf32>
    %c0_4 = arith.constant 0 : index
    %c0_5 = arith.constant 0 : index
    %c0_6 = arith.constant 0 : index
    %5 = vector.load %arg3[%c0_4, %c0_5, %c0_6] : memref<3x1x128xf32, #tpu.memory_space<vmem>>, vector<1x1x128xf32>
    %6 = vector.shape_cast %5 : vector<1x1x128xf32> to vector<1x128xf32>
    %7 = vector.broadcast %6 : vector<1x128xf32> to vector<16x128xf32>
    %8 = arith.addf %4, %7 : vector<16x128xf32>
    %9 = arith.mulf %0, %8 : vector<16x128xf32>
    %10 = arith.addf %9, %0 : vector<16x128xf32>
    %11 = arith.truncf %10 : vector<16x128xf32> to vector<16x128xbf16>
    %c1 = arith.constant 1 : index
    %c0_7 = arith.constant 0 : index
    %c0_8 = arith.constant 0 : index
    %12 = vector.load %arg2[%c1, %c0_7, %c0_8] : memref<3x128x128xbf16, #tpu.memory_space<vmem>>, vector<1x128x128xbf16>
    %13 = vector.shape_cast %12 : vector<1x128x128xbf16> to vector<128x128xbf16>
    %cst_9 = arith.constant dense<0.000000e+00> : vector<16x128xf32>
    %14 = tpu.matmul %11, %13, %cst_9 {dimension_numbers = #tpu.dot_dimension_numbers<[1], [0], [0], [1], [0, 0, 1, 1], [], []>} : vector<16x128xbf16>, vector<128x128xbf16>, vector<16x128xf32> -> vector<16x128xf32>
    %c1_10 = arith.constant 1 : index
    %c0_11 = arith.constant 0 : index
    %c0_12 = arith.constant 0 : index
    %15 = vector.load %arg3[%c1_10, %c0_11, %c0_12] : memref<3x1x128xf32, #tpu.memory_space<vmem>>, vector<1x1x128xf32>
    %16 = vector.shape_cast %15 : vector<1x1x128xf32> to vector<1x128xf32>
    %17 = vector.broadcast %16 : vector<1x128xf32> to vector<16x128xf32>
    %18 = arith.addf %14, %17 : vector<16x128xf32>
    %19 = arith.mulf %0, %18 : vector<16x128xf32>
    %20 = arith.addf %19, %10 : vector<16x128xf32>
    %21 = arith.truncf %20 : vector<16x128xf32> to vector<16x128xbf16>
    %c2 = arith.constant 2 : index
    %c0_13 = arith.constant 0 : index
    %c0_14 = arith.constant 0 : index
    %22 = vector.load %arg2[%c2, %c0_13, %c0_14] : memref<3x128x128xbf16, #tpu.memory_space<vmem>>, vector<1x128x128xbf16>
    %23 = vector.shape_cast %22 : vector<1x128x128xbf16> to vector<128x128xbf16>
    %cst_15 = arith.constant dense<0.000000e+00> : vector<16x128xf32>
    %24 = tpu.matmul %21, %23, %cst_15 {dimension_numbers = #tpu.dot_dimension_numbers<[1], [0], [0], [1], [0, 0, 1, 1], [], []>} : vector<16x128xbf16>, vector<128x128xbf16>, vector<16x128xf32> -> vector<16x128xf32>
    %c2_16 = arith.constant 2 : index
    %c0_17 = arith.constant 0 : index
    %c0_18 = arith.constant 0 : index
    %25 = vector.load %arg3[%c2_16, %c0_17, %c0_18] : memref<3x1x128xf32, #tpu.memory_space<vmem>>, vector<1x1x128xf32>
    %26 = vector.shape_cast %25 : vector<1x1x128xf32> to vector<1x128xf32>
    %27 = vector.broadcast %26 : vector<1x128xf32> to vector<16x128xf32>
    %28 = arith.addf %24, %27 : vector<16x128xf32>
    %29 = arith.mulf %0, %28 : vector<16x128xf32>
    %30 = arith.addf %29, %20 : vector<16x128xf32>
    %c0_19 = arith.constant 0 : index
    %c0_20 = arith.constant 0 : index
    %31 = vector.load %arg4[%c0_19, %c0_20] : memref<16x128xf32, #tpu.memory_space<vmem>>, vector<16x128xf32>
    tpu.vector_store %arg4[%c0_19, %c0_20], %30 {strides = array<i32>} : memref<16x128xf32, #tpu.memory_space<vmem>>, vector<16x128xf32>,
    return
  }
  func.func @transform_0(%arg0: i32) -> (i32, i32) {
    %c0_i32 = arith.constant 0 : i32
    %c0_i32_0 = arith.constant 0 : i32
    return %arg0, %c0_i32 : i32, i32
  }
  func.func @transform_1(%arg0: i32) -> (i32, i32, i32) {
    %c0_i32 = arith.constant 0 : i32
    %c0_i32_0 = arith.constant 0 : i32
    %c0_i32_1 = arith.constant 0 : i32
    %c0_i32_2 = arith.constant 0 : i32
    return %c0_i32, %c0_i32_0, %c0_i32_1 : i32, i32, i32
  }
  func.func @transform_2(%arg0: i32) -> (i32, i32, i32) {
    %c0_i32 = arith.constant 0 : i32
    %c0_i32_0 = arith.constant 0 : i32
    %c0_i32_1 = arith.constant 0 : i32
    %c0_i32_2 = arith.constant 0 : i32
    return %c0_i32, %c0_i32_0, %c0_i32_1 : i32, i32, i32
  }
  func.func @transform_3(%arg0: i32) -> (i32, i32) {
    %c0_i32 = arith.constant 0 : i32
    %c0_i32_0 = arith.constant 0 : i32
    return %arg0, %c0_i32 : i32, i32
  }
}

</mosaic_0001>

<llo_original>
// kernel: tpu_custom_call.1
$region0: #{tpu_custom_call.1}
  #allocation0 [shape = 'u32[]', space=smem, size = 0x4, offset = 0x4, fixed_abs, tag = 'smem constant byte address 0x4 - core index']
  #allocation1 [shape = 'u32[144,128]{1,0:T(1,128)}', space=vmem, size = 0x12000, scoped, tag = 'internal scratch']
  %s0 = inlined_call_operand.hbm [shape: f32[32,128], index: 0, kind: input, shape index: {}]
  %s1 = inlined_call_operand.hbm [shape: bf16[3,128,128], index: 1, kind: input, shape index: {}]
  %s2 = inlined_call_operand.vmem [shape: f32[3,1,128], index: 2, kind: input, shape index: {}]
  %s3 = inlined_call_operand.hbm [shape: f32[32,128], index: 3, kind: output, shape index: {}]
  %s4 = sld [smem:[#allocation0]]
  $region53: #{tpu_custom_call.1} parent=0
    _
  %s6 = ssub.s32 1, %s4
  %s7 = scalar_select 0, %s6, %s4
  $region1: #{tpu_custom_call.1} parent=0
    #allocation2 [shape = 'u8[16384]{0}', space=vmem, size = 0x4000, scoped, tag = 'input window, operand 0']
    #allocation3 [shape = 's32[2]{0}', space=sflag, size = 0x8, scoped, tag = 'scoped memory for tpu_custom_call.1']
    #allocation4 [shape = 's32[2]{0}', space=sflag, size = 0x8, scoped, tag = 'scoped memory for tpu_custom_call.1']
    #allocation5 [shape = 'u8[98304]{0}', space=vmem, size = 0x18000, scoped, tag = 'input window, operand 1, single buffered']
    #allocation6 [shape = 's32[1]{0}', space=sflag, size = 0x4, scoped, tag = 'scoped memory for tpu_custom_call.1']
    #allocation7 [shape = 'u8[16384]{0}', space=vmem, size = 0x4000, scoped, tag = 'output window, operand 0']
    %8 = vsyncpa [#allocation3], 0
    %s9 = scalar_lea.sflag [#allocation3], 1
    %10 = vsyncpa %s9, 0
    %11 = vsyncpa [#allocation6], 0
    %12 = vsyncpa [#allocation4], 0
    %s13 = scalar_lea.sflag [#allocation4], 1
    %14 = vsyncpa %s13, 0
    loop: start=0, step=1, limit=4
    $region2: #{tpu_custom_call.1} parent=1 // loop_pre_header
      _
    $region3: #{tpu_custom_call.1} parent=1 // loop_header
      %s16 = sphi 0, %s20
      %p17 = scmp.ge.s32.totalorder %s16, 4
      %s26 = sphi 0, %s28
      %s29 = sphi 0, %s26
      %s30 = sphi 0, %s29
      %s46 = sphi 0, %s30
      %s50 = sphi 0, %s50
      %s52 = sphi 0, %s50
      %s53 = sphi 0, %s52
      %s67 = sphi 0, %s53
      %s71 = sphi 0, %s71
      %s73 = sphi 0, %s71
      %s74 = sphi 0, %s73
      %s88 = sphi 0, %s74
      %s94 = sphi 0, %s96
      %s97 = sphi 0, %s94
      %s98 = sphi 0, %s97
      %s114 = sphi 0, %s98
    $region4: #{tpu_custom_call.1} parent=1 // loop_header_branch
      %19 = sbr.rel (%p17) target = $region8
    $region5: #{tpu_custom_call.1} parent=1 // loop_body
      %s21 = ssub.s32 %s16, 1
      %s22 = ssub.s32 %s16, 2
      %s23 = sadd.s32 %s16, 1
      %s24 = ssub.s32 %s16, %s23
      %p25 = scmp.eq.s32.totalorder %s24, 0
      %s27 = sadd.s32 %s26, 1
      %s28 = scalar_select %p25, %s26, %s27
      %p31 = pneg %p25
      %p32 = scmp.eq.s32.totalorder %s16, 1
      %p33 = por %p31, %p32
      %p34 = scmp.ne.s32.totalorder %s26, %s29
      %p35 = scmp.eq.s32.totalorder %s16, 0
      %p36 = por %p34, %p35
      %p37 = scmp.ne.s32.totalorder %s26, %s29
      %p38 = scmp.eq.s32.totalorder %s21, 1
      %p39 = por %p37, %p38
      %p40 = scmp.ne.s32.totalorder %s29, %s30
      %p41 = scmp.eq.s32.totalorder %s21, 0
      %p42 = por %p40, %p41
      %p43 = scmp.ne.s32.totalorder %s29, %s30
      %p44 = scmp.eq.s32.totalorder %s22, 1
      %p45 = por %p43, %p44
      %p47 = scmp.ne.s32.totalorder %s30, %s46
      %p48 = scmp.eq.s32.totalorder %s22, 0
      %p49 = por %p47, %p48
      %s51 = sadd.s32 %s50, 1
      %p54 = scmp.eq.s32.totalorder %s16, 1
      %p55 = scmp.ne.s32.totalorder %s50, %s52
      %p56 = scmp.eq.s32.totalorder %s16, 0
      %p57 = por %p55, %p56
      %p58 = scmp.ne.s32.totalorder %s50, %s52
      %p59 = scmp.eq.s32.totalorder %s21, 1
      %p60 = por %p58, %p59
      %p61 = scmp.ne.s32.totalorder %s52, %s53
      %p62 = scmp.eq.s32.totalorder %s21, 0
      %p63 = por %p61, %p62
      %p64 = scmp.ne.s32.totalorder %s52, %s53
      %p65 = scmp.eq.s32.totalorder %s22, 1
      %p66 = por %p64, %p65
      %p68 = scmp.ne.s32.totalorder %s53, %s67
      %p69 = scmp.eq.s32.totalorder %s22, 0
      %p70 = por %p68, %p69
      %s72 = sadd.s32 %s71, 1
      %p75 = scmp.eq.s32.totalorder %s16, 1
      %p76 = scmp.ne.s32.totalorder %s71, %s73
      %p77 = scmp.eq.s32.totalorder %s16, 0
      %p78 = por %p76, %p77
      %p79 = scmp.ne.s32.totalorder %s71, %s73
      %p80 = scmp.eq.s32.totalorder %s21, 1
      %p81 = por %p79, %p80
      %p82 = scmp.ne.s32.totalorder %s73, %s74
      %p83 = scmp.eq.s32.totalorder %s21, 0
      %p84 = por %p82, %p83
      %p85 = scmp.ne.s32.totalorder %s73, %s74
      %p86 = scmp.eq.s32.totalorder %s22, 1
      %p87 = por %p85, %p86
      %p89 = scmp.ne.s32.totalorder %s74, %s88
      %p90 = scmp.eq.s32.totalorder %s22, 0
      %p91 = por %p89, %p90
      %s92 = ssub.s32 %s16, %s23
      %p93 = scmp.eq.s32.totalorder %s92, 0
      %s95 = sadd.s32 %s94, 1
      %s96 = scalar_select %p93, %s94, %s95
      %p99 = pneg %p93
      %p100 = scmp.eq.s32.totalorder %s16, 1
      %p101 = por %p99, %p100
      %p102 = scmp.ne.s32.totalorder %s94, %s97
      %p103 = scmp.eq.s32.totalorder %s16, 0
      %p104 = por %p102, %p103
      %p105 = scmp.ne.s32.totalorder %s94, %s97
      %p106 = scmp.eq.s32.totalorder %s21, 1
      %p107 = por %p105, %p106
      %p108 = scmp.ne.s32.totalorder %s97, %s98
      %p109 = scmp.eq.s32.totalorder %s21, 0
      %p110 = por %p108, %p109
      %p111 = scmp.ne.s32.totalorder %s97, %s98
      %p112 = scmp.eq.s32.totalorder %s22, 1
      %p113 = por %p111, %p112
      %p115 = scmp.ne.s32.totalorder %s98, %s114
      %p116 = scmp.eq.s32.totalorder %s22, 0
      %p117 = por %p115, %p116
      %p118 = scmp.le.s32.totalorder 1, %s16
      %p119 = scmp.lt.s32.totalorder %s16, 3
      %p120 = pnand %p118, %p119
      %p121 = pneg %p120
      // Predicated region
      $region9: #{tpu_custom_call.1} parent=5 // pred_check
        _
      $region10: #{tpu_custom_call.1} parent=5 // pred_check_branch
        %123 = sbr.rel (%p120) target = $region12
      $region11: #{tpu_custom_call.1} parent=5 // pred_region
        %s124 = ssub.s32 %s16, 1
        // Predicated region
        $region13: #{tpu_custom_call.1} parent=11 // pred_check
          %p125 = pneg %p63
        $region14: #{tpu_custom_call.1} parent=11 // pred_check_branch
          %127 = sbr.rel (%p125) target = $region16
        $region15: #{tpu_custom_call.1} parent=11 // pred_region
          %s129 = ssub.s32 3072, 3072
          %130 = vsyncadd [#allocation6], %s129
          %s131 = sshll.u32 [#allocation5], 4
          %s132 = int_to_ptr.vmem [resolvable:$true] %s131
          %137 = dma.hbm_to_vmem [thread:$0]  %s1, 3072, %s132, [#allocation6], 64, 64, 4
        $region16: #{tpu_custom_call.1} parent=11 // pred_fallthru
          _
        // Predicated region
        $region17: #{tpu_custom_call.1} parent=11 // pred_check
          %p138 = pneg %p84
        $region18: #{tpu_custom_call.1} parent=11 // pred_check_branch
          %140 = sbr.rel (%p138) target = $region20
        $region19: #{tpu_custom_call.1} parent=11 // pred_region
          _
        $region20: #{tpu_custom_call.1} parent=11 // pred_fallthru
          _
      $region12: #{tpu_custom_call.1} parent=5 // pred_fallthru
        _
      %p141 = scmp.lt.s32.totalorder %s16, 2
      // Predicated region
      $region21: #{tpu_custom_call.1} parent=5 // pred_check
        %p142 = pneg %p141
      $region22: #{tpu_custom_call.1} parent=5 // pred_check_branch
        %144 = sbr.rel (%p142) target = $region24
      $region23: #{tpu_custom_call.1} parent=5 // pred_region
        // Predicated region
        $region25: #{tpu_custom_call.1} parent=23 // pred_check
          %p145 = pneg %p36
        $region26: #{tpu_custom_call.1} parent=23 // pred_check_branch
          %147 = sbr.rel (%p145) target = $region28
        $region27: #{tpu_custom_call.1} parent=23 // pred_region
          %s148 = sand.u32 %s26, 1
          %s149 = scalar_lea.sflag [#allocation3], %s148
          %s150 = sand.u32 %s26, 1
          %s151 = smul.addr %s150, 16
          %s152 = scalar_lea.vmem [#allocation2], %s151
          %s153 = smul.u32 2, %s16
          %s155 = ssub.s32 256, 256
          %156 = vsyncadd %s149, %s155
          %s157 = smul.addr %s153, 128
          %s158 = scalar_lea.hbm %s0, %s157
          %s159 = sshll.u32 %s152, 4
          %s160 = int_to_ptr.vmem [resolvable:$true] %s159
          %165 = dma.hbm_to_vmem [thread:$0]  %s158, 256, %s160, %s149, 128, 128, 8
        $region28: #{tpu_custom_call.1} parent=23 // pred_fallthru
          _
      $region24: #{tpu_custom_call.1} parent=5 // pred_fallthru
        _
      %p166 = scmp.le.s32.totalorder 1, %s16
      %p167 = scmp.lt.s32.totalorder %s16, 3
      %p168 = pnand %p166, %p167
      %p169 = pneg %p168
      // Predicated region
      $region29: #{tpu_custom_call.1} parent=5 // pred_check
        _
      $region30: #{tpu_custom_call.1} parent=5 // pred_check_branch
        %171 = sbr.rel (%p168) target = $region32
      $region31: #{tpu_custom_call.1} parent=5 // pred_region
        %s172 = ssub.s32 %s16, 1
        %s173 = sand.u32 %s29, 1
        %s174 = scalar_lea.sflag [#allocation3], %s173
        %s175 = sand.u32 %s29, 1
        %s176 = smul.addr %s175, 16
        %s177 = scalar_lea.vmem [#allocation2], %s176
        // Predicated region
        $region33: #{tpu_custom_call.1} parent=31 // pred_check
          %p178 = pneg %p42
        $region34: #{tpu_custom_call.1} parent=31 // pred_check_branch
          %180 = sbr.rel (%p178) target = $region36
        $region35: #{tpu_custom_call.1} parent=31 // pred_region
          %181 = dma.done %s174, 256
        $region36: #{tpu_custom_call.1} parent=31 // pred_fallthru
          _
        // Predicated region
        $region37: #{tpu_custom_call.1} parent=31 // pred_check
          %p182 = pneg %p63
        $region38: #{tpu_custom_call.1} parent=31 // pred_check_branch
          %184 = sbr.rel (%p182) target = $region40
        $region39: #{tpu_custom_call.1} parent=31 // pred_region
          %185 = dma.done [#allocation6], 3072
        $region40: #{tpu_custom_call.1} parent=31 // pred_fallthru
          _
        %s186 = sand.u32 %s29, 1
        %s187 = scalar_lea.sflag [#allocation3], %s186
        %s188 = sand.u32 %s29, 1
        %s189 = smul.addr %s188, 16
        %s190 = scalar_lea.vmem [#allocation2], %s189
        %p191 = pneg %p42
        %p192 = pneg %p39
        %p193 = pneg %p63
        %p194 = pneg %p60
        %p195 = pneg %p84
        %p196 = pneg %p81
        %p197 = pneg %p110
        %p198 = pneg %p107
        %s199 = sand.u32 %s97, 1
        %s200 = scalar_lea.sflag [#allocation4], %s199
        %s201 = sand.u32 %s97, 1
        %s202 = smul.addr %s201, 16
        %s203 = scalar_lea.vmem [#allocation7], %s202
        %s204 = smul.u32 2, %s21
        %s205 = smul.u32 2, %s21
        %v207 = vld [vmem:[%s177] sm:$0xff]
        %v208 = vld [vmem:[%s177 + $0x8] sm:$0xff]
        %v209 = vpack.c.bf16 %v208, %v207
        %v210 = vld [vmem:[#allocation5] sm:$0xf]
        %v211 = vld [vmem:[#allocation5 + $0x4] sm:$0xf]
        %v212 = vld [vmem:[#allocation5 + $0x8] sm:$0xf]
        %v213 = vld [vmem:[#allocation5 + $0xc] sm:$0xf]
        %v214 = vld [vmem:[#allocation5 + $0x10] sm:$0xf]
        %v215 = vld [vmem:[#allocation5 + $0x14] sm:$0xf]
        %v216 = vld [vmem:[#allocation5 + $0x18] sm:$0xf]
        %v217 = vld [vmem:[#allocation5 + $0x1c] sm:$0xf]
        %v218 = vld [vmem:[#allocation5 + $0x20] sm:$0xf]
        %v219 = vld [vmem:[#allocation5 + $0x24] sm:$0xf]
        %v220 = vld [vmem:[#allocation5 + $0x28] sm:$0xf]
        %v221 = vld [vmem:[#allocation5 + $0x2c] sm:$0xf]
        %v222 = vld [vmem:[#allocation5 + $0x30] sm:$0xf]
        %v223 = vld [vmem:[#allocation5 + $0x34] sm:$0xf]
        %v224 = vld [vmem:[#allocation5 + $0x38] sm:$0xf]
        %v225 = vld [vmem:[#allocation5 + $0x3c] sm:$0xf]
        %v226 = vld [vmem:[%s2] sm:$0x1]
        %v228 = vlaneseq
        %v229 = vshrl.u32 %v228, 7
        %v230 = vsub.s32 0, %v229
        %v231 = vrot.slane %v226, %v230
        %v249 = vunpack.c.l.b16 %v210
        %v250 = vunpack.c.l.b16 %v211
        %v251 = vunpack.c.l.b16 %v212
        %v252 = vunpack.c.l.b16 %v213
        %v253 = vunpack.c.l.b16 %v214
        %v254 = vunpack.c.l.b16 %v215
        %v255 = vunpack.c.l.b16 %v216
        %v256 = vunpack.c.l.b16 %v217
        %v257 = vunpack.c.l.b16 %v218
        %v258 = vunpack.c.l.b16 %v219
        %v259 = vunpack.c.l.b16 %v220
        %v260 = vunpack.c.l.b16 %v221
        %v261 = vunpack.c.l.b16 %v222
        %v262 = vunpack.c.l.b16 %v223
        %v263 = vunpack.c.l.b16 %v224
        %v264 = vunpack.c.l.b16 %v225
        %v265 = vpack.c.b16 %v250, %v249
        %v266 = vpack.c.b16 %v252, %v251
        %v267 = vpack.c.b16 %v254, %v253
        %v268 = vpack.c.b16 %v256, %v255
        %v269 = vpack.c.b16 %v258, %v257
        %v270 = vpack.c.b16 %v260, %v259
        %v271 = vpack.c.b16 %v262, %v261
        %v272 = vpack.c.b16 %v264, %v263
        %281 = vmatprep.subr.bf16.mxu0 0
        %282 = vmatpush1.bf16.msra.mxu0 %v265
        %283 = vmatprep.subr.bf16.mxu0 0
        %284 = vmatpush1.bf16.msra.mxu0 %v266
        %285 = vmatprep.subr.bf16.mxu0 0
        %286 = vmatpush1.bf16.msra.mxu0 %v267
        %287 = vmatprep.subr.bf16.mxu0 0
        %288 = vmatpush1.bf16.msra.mxu0 %v268
        %289 = vmatprep.subr.bf16.mxu0 0
        %290 = vmatpush1.bf16.msra.mxu0 %v269
        %291 = vmatprep.subr.bf16.mxu0 0
        %292 = vmatpush1.bf16.msra.mxu0 %v270
        %293 = vmatprep.subr.bf16.mxu0 0
        %294 = vmatpush1.bf16.msra.mxu0 %v271
        %295 = vmatprep.subr.bf16.mxu0 0
        %296 = vmatpush1.bf16.msra.mxu0 %v272
        %297 = vmatprep.subr.bf16.mxu0 0
        %298 = vmatpush1.bf16.msra.mxu0 0
        %299 = vmatprep.subr.bf16.mxu0 0
        %300 = vmatpush1.bf16.msra.mxu0 0
        %301 = vmatprep.subr.bf16.mxu0 0
        %302 = vmatpush1.bf16.msra.mxu0 0
        %303 = vmatprep.subr.bf16.mxu0 0
        %304 = vmatpush1.bf16.msra.mxu0 0
        %305 = vmatprep.subr.bf16.mxu0 0
        %306 = vmatpush1.bf16.msra.mxu0 0
        %307 = vmatprep.subr.bf16.mxu0 0
        %308 = vmatpush1.bf16.msra.mxu0 0
        %309 = vmatprep.subr.bf16.mxu0 0
        %310 = vmatpush1.bf16.msra.mxu0 0
        %311 = vmatprep.subr.bf16.mxu0 0
        %312 = vmatpush1.bf16.msra.mxu0 0
        %313 = vmatprep.mubr.bf16.mxu0 0
        %314 = vmatmul.mubr.bf16.gmra.mrb[0].mxu0 %v209
        %v315 = vpop.f32.mrb[0].mxu0
        %v316 = vadd.f32 %v231, %v315
        %v317 = vpop.f32.mrb[0].mxu0
        %v318 = vpop.f32.mrb[0].mxu0
        %v319 = vadd.f32 %v231, %v318
        %v320 = vpop.f32.mrb[0].mxu0
        %321 = vdwg.mxu0
        %v322 = vmul.f32 %v207, %v316
        %v323 = vmul.f32 %v208, %v319
        %v324 = vadd.f32 %v322, %v207
        %v325 = vadd.f32 %v323, %v208
        %v326 = vpack.c.bf16 %v325, %v324
        %s327 = scalar_lea.vmem [#allocation5], 64
        %v328 = vld [vmem:[%s327] sm:$0xf]
        %v329 = vld [vmem:[%s327 + $0x4] sm:$0xf]
        %v330 = vld [vmem:[%s327 + $0x8] sm:$0xf]
        %v331 = vld [vmem:[%s327 + $0xc] sm:$0xf]
        %v332 = vld [vmem:[%s327 + $0x10] sm:$0xf]
        %v333 = vld [vmem:[%s327 + $0x14] sm:$0xf]
        %v334 = vld [vmem:[%s327 + $0x18] sm:$0xf]
        %v335 = vld [vmem:[%s327 + $0x1c] sm:$0xf]
        %v336 = vld [vmem:[%s327 + $0x20] sm:$0xf]
        %v337 = vld [vmem:[%s327 + $0x24] sm:$0xf]
        %v338 = vld [vmem:[%s327 + $0x28] sm:$0xf]
        %v339 = vld [vmem:[%s327 + $0x2c] sm:$0xf]
        %v340 = vld [vmem:[%s327 + $0x30] sm:$0xf]
        %v341 = vld [vmem:[%s327 + $0x34] sm:$0xf]
        %v342 = vld [vmem:[%s327 + $0x38] sm:$0xf]
        %v343 = vld [vmem:[%s327 + $0x3c] sm:$0xf]
        %s344 = scalar_lea.vmem %s2, 1
        %v345 = vld [vmem:[%s344] sm:$0x1]
        %v347 = vlaneseq
        %v348 = vshrl.u32 %v347, 7
        %v349 = vsub.s32 0, %v348
        %v350 = vrot.slane %v345, %v349
        %v368 = vunpack.c.l.b16 %v328
        %v369 = vunpack.c.l.b16 %v329
        %v370 = vunpack.c.l.b16 %v330
        %v371 = vunpack.c.l.b16 %v331
        %v372 = vunpack.c.l.b16 %v332
        %v373 = vunpack.c.l.b16 %v333
        %v374 = vunpack.c.l.b16 %v334
        %v375 = vunpack.c.l.b16 %v335
        %v376 = vunpack.c.l.b16 %v336
        %v377 = vunpack.c.l.b16 %v337
        %v378 = vunpack.c.l.b16 %v338
        %v379 = vunpack.c.l.b16 %v339
        %v380 = vunpack.c.l.b16 %v340
        %v381 = vunpack.c.l.b16 %v341
        %v382 = vunpack.c.l.b16 %v342
        %v383 = vunpack.c.l.b16 %v343
        %v384 = vpack.c.b16 %v369, %v368
        %v385 = vpack.c.b16 %v371, %v370
        %v386 = vpack.c.b16 %v373, %v372
        %v387 = vpack.c.b16 %v375, %v374
        %v388 = vpack.c.b16 %v377, %v376
        %v389 = vpack.c.b16 %v379, %v378
        %v390 = vpack.c.b16 %v381, %v380
        %v391 = vpack.c.b16 %v383, %v382
        %400 = vmatprep.subr.bf16.mxu0 0
        %401 = vmatpush1.bf16.msra.mxu0 %v384
        %402 = vmatprep.subr.bf16.mxu0 0
        %403 = vmatpush1.bf16.msra.mxu0 %v385
        %404 = vmatprep.subr.bf16.mxu0 0
        %405 = vmatpush1.bf16.msra.mxu0 %v386
        %406 = vmatprep.subr.bf16.mxu0 0
        %407 = vmatpush1.bf16.msra.mxu0 %v387
        %408 = vmatprep.subr.bf16.mxu0 0
        %409 = vmatpush1.bf16.msra.mxu0 %v388
        %410 = vmatprep.subr.bf16.mxu0 0
        %411 = vmatpush1.bf16.msra.mxu0 %v389
        %412 = vmatprep.subr.bf16.mxu0 0
        %413 = vmatpush1.bf16.msra.mxu0 %v390
        %414 = vmatprep.subr.bf16.mxu0 0
        %415 = vmatpush1.bf16.msra.mxu0 %v391
        %416 = vmatprep.subr.bf16.mxu0 0
        %417 = vmatpush1.bf16.msra.mxu0 0
        %418 = vmatprep.subr.bf16.mxu0 0
        %419 = vmatpush1.bf16.msra.mxu0 0
        %420 = vmatprep.subr.bf16.mxu0 0
        %421 = vmatpush1.bf16.msra.mxu0 0
        %422 = vmatprep.subr.bf16.mxu0 0
        %423 = vmatpush1.bf16.msra.mxu0 0
        %424 = vmatprep.subr.bf16.mxu0 0
        %425 = vmatpush1.bf16.msra.mxu0 0
        %426 = vmatprep.subr.bf16.mxu0 0
        %427 = vmatpush1.bf16.msra.mxu0 0
        %428 = vmatprep.subr.bf16.mxu0 0
        %429 = vmatpush1.bf16.msra.mxu0 0
        %430 = vmatprep.subr.bf16.mxu0 0
        %431 = vmatpush1.bf16.msra.mxu0 0
        %432 = vmatprep.mubr.bf16.mxu0 0
        %433 = vmatmul.mubr.bf16.gmra.mrb[0].mxu0 %v326
        %v434 = vpop.f32.mrb[0].mxu0
        %v435 = vadd.f32 %v350, %v434
        %v436 = vpop.f32.mrb[0].mxu0
        %v437 = vpop.f32.mrb[0].mxu0
        %v438 = vadd.f32 %v350, %v437
        %v439 = vpop.f32.mrb[0].mxu0
        %440 = vdwg.mxu0
        %v441 = vmul.f32 %v207, %v435
        %v442 = vmul.f32 %v208, %v438
        %v443 = vadd.f32 %v441, %v324
        %v444 = vadd.f32 %v442, %v325
        %v445 = vpack.c.bf16 %v444, %v443
        %s446 = scalar_lea.vmem [#allocation5], 128
        %v447 = vld [vmem:[%s446] sm:$0xf]
        %v448 = vld [vmem:[%s446 + $0x4] sm:$0xf]
        %v449 = vld [vmem:[%s446 + $0x8] sm:$0xf]
        %v450 = vld [vmem:[%s446 + $0xc] sm:$0xf]
        %v451 = vld [vmem:[%s446 + $0x10] sm:$0xf]
        %v452 = vld [vmem:[%s446 + $0x14] sm:$0xf]
        %v453 = vld [vmem:[%s446 + $0x18] sm:$0xf]
        %v454 = vld [vmem:[%s446 + $0x1c] sm:$0xf]
        %v455 = vld [vmem:[%s446 + $0x20] sm:$0xf]
        %v456 = vld [vmem:[%s446 + $0x24] sm:$0xf]
        %v457 = vld [vmem:[%s446 + $0x28] sm:$0xf]
        %v458 = vld [vmem:[%s446 + $0x2c] sm:$0xf]
        %v459 = vld [vmem:[%s446 + $0x30] sm:$0xf]
        %v460 = vld [vmem:[%s446 + $0x34] sm:$0xf]
        %v461 = vld [vmem:[%s446 + $0x38] sm:$0xf]
        %v462 = vld [vmem:[%s446 + $0x3c] sm:$0xf]
        %s463 = scalar_lea.vmem %s2, 2
        %v464 = vld [vmem:[%s463] sm:$0x1]
        %v466 = vlaneseq
        %v467 = vshrl.u32 %v466, 7
        %v468 = vsub.s32 0, %v467
        %v469 = vrot.slane %v464, %v468
        %v487 = vunpack.c.l.b16 %v447
        %v488 = vunpack.c.l.b16 %v448
        %v489 = vunpack.c.l.b16 %v449
        %v490 = vunpack.c.l.b16 %v450
        %v491 = vunpack.c.l.b16 %v451
        %v492 = vunpack.c.l.b16 %v452
        %v493 = vunpack.c.l.b16 %v453
        %v494 = vunpack.c.l.b16 %v454
        %v495 = vunpack.c.l.b16 %v455
        %v496 = vunpack.c.l.b16 %v456
        %v497 = vunpack.c.l.b16 %v457
        %v498 = vunpack.c.l.b16 %v458
        %v499 = vunpack.c.l.b16 %v459
        %v500 = vunpack.c.l.b16 %v460
        %v501 = vunpack.c.l.b16 %v461
        %v502 = vunpack.c.l.b16 %v462
        %v503 = vpack.c.b16 %v488, %v487
        %v504 = vpack.c.b16 %v490, %v489
        %v505 = vpack.c.b16 %v492, %v491
        %v506 = vpack.c.b16 %v494, %v493
        %v507 = vpack.c.b16 %v496, %v495
        %v508 = vpack.c.b16 %v498, %v497
        %v509 = vpack.c.b16 %v500, %v499
        %v510 = vpack.c.b16 %v502, %v501
        %519 = vmatprep.subr.bf16.mxu0 0
        %520 = vmatpush1.bf16.msra.mxu0 %v503
        %521 = vmatprep.subr.bf16.mxu0 0
        %522 = vmatpush1.bf16.msra.mxu0 %v504
        %523 = vmatprep.subr.bf16.mxu0 0
        %524 = vmatpush1.bf16.msra.mxu0 %v505
        %525 = vmatprep.subr.bf16.mxu0 0
        %526 = vmatpush1.bf16.msra.mxu0 %v506
        %527 = vmatprep.subr.bf16.mxu0 0
        %528 = vmatpush1.bf16.msra.mxu0 %v507
        %529 = vmatprep.subr.bf16.mxu0 0
        %530 = vmatpush1.bf16.msra.mxu0 %v508
        %531 = vmatprep.subr.bf16.mxu0 0
        %532 = vmatpush1.bf16.msra.mxu0 %v509
        %533 = vmatprep.subr.bf16.mxu0 0
        %534 = vmatpush1.bf16.msra.mxu0 %v510
        %535 = vmatprep.subr.bf16.mxu0 0
        %536 = vmatpush1.bf16.msra.mxu0 0
        %537 = vmatprep.subr.bf16.mxu0 0
        %538 = vmatpush1.bf16.msra.mxu0 0
        %539 = vmatprep.subr.bf16.mxu0 0
        %540 = vmatpush1.bf16.msra.mxu0 0
        %541 = vmatprep.subr.bf16.mxu0 0
        %542 = vmatpush1.bf16.msra.mxu0 0
        %543 = vmatprep.subr.bf16.mxu0 0
        %544 = vmatpush1.bf16.msra.mxu0 0
        %545 = vmatprep.subr.bf16.mxu0 0
        %546 = vmatpush1.bf16.msra.mxu0 0
        %547 = vmatprep.subr.bf16.mxu0 0
        %548 = vmatpush1.bf16.msra.mxu0 0
        %549 = vmatprep.subr.bf16.mxu0 0
        %550 = vmatpush1.bf16.msra.mxu0 0
        %551 = vmatprep.mubr.bf16.mxu0 0
        %552 = vmatmul.mubr.bf16.gmra.mrb[0].mxu0 %v445
        %v553 = vpop.f32.mrb[0].mxu0
        %v554 = vadd.f32 %v469, %v553
        %v555 = vpop.f32.mrb[0].mxu0
        %v556 = vpop.f32.mrb[0].mxu0
        %v557 = vadd.f32 %v469, %v556
        %v558 = vpop.f32.mrb[0].mxu0
        %559 = vdwg.mxu0
        %v560 = vmul.f32 %v207, %v554
        %v561 = vmul.f32 %v208, %v557
        %v562 = vadd.f32 %v560, %v443
        %v563 = vadd.f32 %v561, %v444
        %564 = vst [vmem:[%s203] sm:$0xff] %v562
        %565 = vst [vmem:[%s203 + $0x8] sm:$0xff] %v563
        %s566 = sand.u32 %s97, 1
        %s567 = scalar_lea.sflag [#allocation4], %s566
        %s568 = sand.u32 %s97, 1
        %s569 = smul.addr %s568, 16
        %s570 = scalar_lea.vmem [#allocation7], %s569
        // Predicated region
        $region41: #{tpu_custom_call.1} parent=31 // pred_check
          %p571 = pneg %p107
        $region42: #{tpu_custom_call.1} parent=31 // pred_check_branch
          %573 = sbr.rel (%p571) target = $region44
        $region43: #{tpu_custom_call.1} parent=31 // pred_region
          %s574 = smul.u32 2, %s21
          %s576 = ssub.s32 256, 256
          %577 = vsyncadd %s567, %s576
          %s578 = smul.addr %s574, 128
          %s579 = scalar_lea.hbm %s3, %s578
          %s580 = sshll.u32 %s570, 4
          %s581 = int_to_ptr.vmem [resolvable:$true] %s580
          %586 = dma.vmem_to_hbm [thread:$0]  %s581, 256, %s579, %s567, 128, 128, 8
        $region44: #{tpu_custom_call.1} parent=31 // pred_fallthru
          _
      $region32: #{tpu_custom_call.1} parent=5 // pred_fallthru
        _
      %p587 = scmp.le.s32.totalorder 2, %s16
      // Predicated region
      $region45: #{tpu_custom_call.1} parent=5 // pred_check
        %p588 = pneg %p587
      $region46: #{tpu_custom_call.1} parent=5 // pred_check_branch
        %590 = sbr.rel (%p588) target = $region48
      $region47: #{tpu_custom_call.1} parent=5 // pred_region
        %s591 = ssub.s32 %s16, 2
        // Predicated region
        $region49: #{tpu_custom_call.1} parent=47 // pred_check
          %p592 = pneg %p113
        $region50: #{tpu_custom_call.1} parent=47 // pred_check_branch
          %594 = sbr.rel (%p592) target = $region52
        $region51: #{tpu_custom_call.1} parent=47 // pred_region
          %s595 = sand.u32 %s98, 1
          %s596 = scalar_lea.sflag [#allocation4], %s595
          %s597 = sand.u32 %s98, 1
          %s598 = smul.addr %s597, 16
          %s599 = scalar_lea.vmem [#allocation7], %s598
          %600 = dma.done %s596, 256
        $region52: #{tpu_custom_call.1} parent=47 // pred_fallthru
          _
      $region48: #{tpu_custom_call.1} parent=5 // pred_fallthru
        _
    $region6: #{tpu_custom_call.1} parent=1 // loop_footer
      %s20 = sadd.s32 1, %s16
    $region7: #{tpu_custom_call.1} parent=1 // loop_footer_branch
      %15 = sbr.rel target = $region3
    $region8: #{tpu_custom_call.1} parent=1 // loop_exit
      _
    %601 = vsyncpa [#allocation3], 1
    %s602 = scalar_lea.sflag [#allocation3], 1
    %603 = vsyncpa %s602, 1
    %604 = vsyncpa [#allocation6], 1
    %605 = vsyncpa [#allocation4], 1
    %s606 = scalar_lea.sflag [#allocation4], 1
    %607 = vsyncpa %s606, 1

// kernel: tpu_custom_call.1
$region0: #{tpu_custom_call.1}
  #allocation0 [shape = 'u32[]', space=smem, size = 0x4, offset = 0x4, fixed_abs, tag = 'smem constant byte address 0x4 - core index']
  #allocation1 [shape = 'u32[144,128]{1,0:T(1,128)}', space=vmem, size = 0x12000, scoped, tag = 'internal scratch']
  %s0 = inlined_call_operand.hbm [shape: f32[32,128], index: 0, kind: input, shape index: {}]
  %s1 = inlined_call_operand.hbm [shape: bf16[3,128,128], index: 1, kind: input, shape index: {}]
  %s2 = inlined_call_operand.vmem [shape: f32[3,1,128], index: 2, kind: input, shape index: {}]
  %s3 = inlined_call_operand.hbm [shape: f32[32,128], index: 3, kind: output, shape index: {}]
  %s4 = sld [smem:[#allocation0]]
  $region53: #{tpu_custom_call.1} parent=0
    _
  %s6 = ssub.s32 1, %s4
  %s7 = scalar_select 0, %s6, %s4
  $region1: #{tpu_custom_call.1} parent=0
    #allocation2 [shape = 'u8[16384]{0}', space=vmem, size = 0x4000, scoped, tag = 'input window, operand 0']
    #allocation3 [shape = 's32[2]{0}', space=sflag, size = 0x8, scoped, tag = 'scoped memory for tpu_custom_call.1']
    #allocation4 [shape = 's32[2]{0}', space=sflag, size = 0x8, scoped, tag = 'scoped memory for tpu_custom_call.1']
    #allocation5 [shape = 'u8[98304]{0}', space=vmem, size = 0x18000, scoped, tag = 'input window, operand 1, single buffered']
    #allocation6 [shape = 's32[1]{0}', space=sflag, size = 0x4, scoped, tag = 'scoped memory for tpu_custom_call.1']
    #allocation7 [shape = 'u8[16384]{0}', space=vmem, size = 0x4000, scoped, tag = 'output window, operand 0']
    %8 = vsyncpa [#allocation3], 0
    %s9 = scalar_lea.sflag [#allocation3], 1
    %10 = vsyncpa %s9, 0
    %11 = vsyncpa [#allocation6], 0
    %12 = vsyncpa [#allocation4], 0
    %s13 = scalar_lea.sflag [#allocation4], 1
    %14 = vsyncpa %s13, 0
    loop: start=0, step=1, limit=4
    $region2: #{tpu_custom_call.1} parent=1 // loop_pre_header
      _
    $region3: #{tpu_custom_call.1} parent=1 // loop_header
      %s16 = sphi 0, %s20
      %p17 = scmp.ge.s32.totalorder %s16, 4
      %s26 = sphi 0, %s28
      %s29 = sphi 0, %s26
      %s30 = sphi 0, %s29
      %s46 = sphi 0, %s30
      %s50 = sphi 0, %s50
      %s52 = sphi 0, %s50
      %s53 = sphi 0, %s52
      %s67 = sphi 0, %s53
      %s71 = sphi 0, %s71
      %s73 = sphi 0, %s71
      %s74 = sphi 0, %s73
      %s88 = sphi 0, %s74
      %s94 = sphi 0, %s96
      %s97 = sphi 0, %s94
      %s98 = sphi 0, %s97
      %s114 = sphi 0, %s98
    $region4: #{tpu_custom_call.1} parent=1 // loop_header_branch
      %19 = sbr.rel (%p17) target = $region8
    $region5: #{tpu_custom_call.1} parent=1 // loop_body
      %s21 = ssub.s32 %s16, 1
      %s22 = ssub.s32 %s16, 2
      %s23 = sadd.s32 %s16, 1
      %s24 = ssub.s32 %s16, %s23
      %p25 = scmp.eq.s32.totalorder %s24, 0
      %s27 = sadd.s32 %s26, 1
      %s28 = scalar_select %p25, %s26, %s27
      %p31 = pneg %p25
      %p32 = scmp.eq.s32.totalorder %s16, 1
      %p33 = por %p31, %p32
      %p34 = scmp.ne.s32.totalorder %s26, %s29
      %p35 = scmp.eq.s32.totalorder %s16, 0
      %p36 = por %p34, %p35
      %p37 = scmp.ne.s32.totalorder %s26, %s29
      %p38 = scmp.eq.s32.totalorder %s21, 1
      %p39 = por %p37, %p38
      %p40 = scmp.ne.s32.totalorder %s29, %s30
      %p41 = scmp.eq.s32.totalorder %s21, 0
      %p42 = por %p40, %p41
      %p43 = scmp.ne.s32.totalorder %s29, %s30
      %p44 = scmp.eq.s32.totalorder %s22, 1
      %p45 = por %p43, %p44
      %p47 = scmp.ne.s32.totalorder %s30, %s46
      %p48 = scmp.eq.s32.totalorder %s22, 0
      %p49 = por %p47, %p48
      %s51 = sadd.s32 %s50, 1
      %p54 = scmp.eq.s32.totalorder %s16, 1
      %p55 = scmp.ne.s32.totalorder %s50, %s52
      %p56 = scmp.eq.s32.totalorder %s16, 0
      %p57 = por %p55, %p56
      %p58 = scmp.ne.s32.totalorder %s50, %s52
      %p59 = scmp.eq.s32.totalorder %s21, 1
      %p60 = por %p58, %p59
      %p61 = scmp.ne.s32.totalorder %s52, %s53
      %p62 = scmp.eq.s32.totalorder %s21, 0
      %p63 = por %p61, %p62
      %p64 = scmp.ne.s32.totalorder %s52, %s53
      %p65 = scmp.eq.s32.totalorder %s22, 1
      %p66 = por %p64, %p65
      %p68 = scmp.ne.s32.totalorder %s53, %s67
      %p69 = scmp.eq.s32.totalorder %s22, 0
      %p70 = por %p68, %p69
      %s72 = sadd.s32 %s71, 1
      %p75 = scmp.eq.s32.totalorder %s16, 1
      %p76 = scmp.ne.s32.totalorder %s71, %s73
      %p77 = scmp.eq.s32.totalorder %s16, 0
      %p78 = por %p76, %p77
      %p79 = scmp.ne.s32.totalorder %s71, %s73
      %p80 = scmp.eq.s32.totalorder %s21, 1
      %p81 = por %p79, %p80
      %p82 = scmp.ne.s32.totalorder %s73, %s74
      %p83 = scmp.eq.s32.totalorder %s21, 0
      %p84 = por %p82, %p83
      %p85 = scmp.ne.s32.totalorder %s73, %s74
      %p86 = scmp.eq.s32.totalorder %s22, 1
      %p87 = por %p85, %p86
      %p89 = scmp.ne.s32.totalorder %s74, %s88
      %p90 = scmp.eq.s32.totalorder %s22, 0
      %p91 = por %p89, %p90
      %s92 = ssub.s32 %s16, %s23
      %p93 = scmp.eq.s32.totalorder %s92, 0
      %s95 = sadd.s32 %s94, 1
      %s96 = scalar_select %p93, %s94, %s95
      %p99 = pneg %p93
      %p100 = scmp.eq.s32.totalorder %s16, 1
      %p101 = por %p99, %p100
      %p102 = scmp.ne.s32.totalorder %s94, %s97
      %p103 = scmp.eq.s32.totalorder %s16, 0
      %p104 = por %p102, %p103
      %p105 = scmp.ne.s32.totalorder %s94, %s97
      %p106 = scmp.eq.s32.totalorder %s21, 1
      %p107 = por %p105, %p106
      %p108 = scmp.ne.s32.totalorder %s97, %s98
      %p109 = scmp.eq.s32.totalorder %s21, 0
      %p110 = por %p108, %p109
      %p111 = scmp.ne.s32.totalorder %s97, %s98
      %p112 = scmp.eq.s32.totalorder %s22, 1
      %p113 = por %p111, %p112
      %p115 = scmp.ne.s32.totalorder %s98, %s114
      %p116 = scmp.eq.s32.totalorder %s22, 0
      %p117 = por %p115, %p116
      %p118 = scmp.le.s32.totalorder 1, %s16
      %p119 = scmp.lt.s32.totalorder %s16, 3
      %p120 = pnand %p118, %p119
      %p121 = pneg %p120
      // Predicated region
      $region9: #{tpu_custom_call.1} parent=5 // pred_check
        _
      $region10: #{tpu_custom_call.1} parent=5 // pred_check_branch
        %123 = sbr.rel (%p120) target = $region12
      $region11: #{tpu_custom_call.1} parent=5 // pred_region
        %s124 = ssub.s32 %s16, 1
        // Predicated region
        $region13: #{tpu_custom_call.1} parent=11 // pred_check
          %p125 = pneg %p63
        $region14: #{tpu_custom_call.1} parent=11 // pred_check_branch
          %127 = sbr.rel (%p125) target = $region16
        $region15: #{tpu_custom_call.1} parent=11 // pred_region
          %s129 = ssub.s32 3072, 3072
          %130 = vsyncadd [#allocation6], %s129
          %s131 = sshll.u32 [#allocation5], 4
          %s132 = int_to_ptr.vmem [resolvable:$true] %s131
          %137 = dma.hbm_to_vmem [thread:$0]  %s1, 3072, %s132, [#allocation6], 64, 64, 4
        $region16: #{tpu_custom_call.1} parent=11 // pred_fallthru
          _
        // Predicated region
        $region17: #{tpu_custom_call.1} parent=11 // pred_check
          %p138 = pneg %p84
        $region18: #{tpu_custom_call.1} parent=11 // pred_check_branch
          %140 = sbr.rel (%p138) target = $region20
        $region19: #{tpu_custom_call.1} parent=11 // pred_region
          _
        $region20: #{tpu_custom_call.1} parent=11 // pred_fallthru
          _
      $region12: #{tpu_custom_call.1} parent=5 // pred_fallthru
        _
      %p141 = scmp.lt.s32.totalorder %s16, 2
      // Predicated region
      $region21: #{tpu_custom_call.1} parent=5 // pred_check
        %p142 = pneg %p141
      $region22: #{tpu_custom_call.1} parent=5 // pred_check_branch
        %144 = sbr.rel (%p142) target = $region24
      $region23: #{tpu_custom_call.1} parent=5 // pred_region
        // Predicated region
        $region25: #{tpu_custom_call.1} parent=23 // pred_check
          %p145 = pneg %p36
        $region26: #{tpu_custom_call.1} parent=23 // pred_check_branch
          %147 = sbr.rel (%p145) target = $region28
        $region27: #{tpu_custom_call.1} parent=23 // pred_region
          %s148 = sand.u32 %s26, 1
          %s149 = scalar_lea.sflag [#allocation3], %s148
          %s150 = sand.u32 %s26, 1
          %s151 = smul.addr %s150, 16
          %s152 = scalar_lea.vmem [#allocation2], %s151
          %s153 = smul.u32 2, %s16
          %s155 = ssub.s32 256, 256
          %156 = vsyncadd %s149, %s155
          %s157 = smul.addr %s153, 128
          %s158 = scalar_lea.hbm %s0, %s157
          %s159 = sshll.u32 %s152, 4
          %s160 = int_to_ptr.vmem [resolvable:$true] %s159
          %165 = dma.hbm_to_vmem [thread:$0]  %s158, 256, %s160, %s149, 128, 128, 8
        $region28: #{tpu_custom_call.1} parent=23 // pred_fallthru
          _
      $region24: #{tpu_custom_call.1} parent=5 // pred_fallthru
        _
      %p166 = scmp.le.s32.totalorder 1, %s16
      %p167 = scmp.lt.s32.totalorder %s16, 3
      %p168 = pnand %p166, %p167
      %p169 = pneg %p168
      // Predicated region
      $region29: #{tpu_custom_call.1} parent=5 // pred_check
        _
      $region30: #{tpu_custom_call.1} parent=5 // pred_check_branch
        %171 = sbr.rel (%p168) target = $region32
      $region31: #{tpu_custom_call.1} parent=5 // pred_region
        %s172 = ssub.s32 %s16, 1
        %s173 = sand.u32 %s29, 1
        %s174 = scalar_lea.sflag [#allocation3], %s173
        %s175 = sand.u32 %s29, 1
        %s176 = smul.addr %s175, 16
        %s177 = scalar_lea.vmem [#allocation2], %s176
        // Predicated region
        $region33: #{tpu_custom_call.1} parent=31 // pred_check
          %p178 = pneg %p42
        $region34: #{tpu_custom_call.1} parent=31 // pred_check_branch
          %180 = sbr.rel (%p178) target = $region36
        $region35: #{tpu_custom_call.1} parent=31 // pred_region
          %181 = dma.done %s174, 256
        $region36: #{tpu_custom_call.1} parent=31 // pred_fallthru
          _
        // Predicated region
        $region37: #{tpu_custom_call.1} parent=31 // pred_check
          %p182 = pneg %p63
        $region38: #{tpu_custom_call.1} parent=31 // pred_check_branch
          %184 = sbr.rel (%p182) target = $region40
        $region39: #{tpu_custom_call.1} parent=31 // pred_region
          %185 = dma.done [#allocation6], 3072
        $region40: #{tpu_custom_call.1} parent=31 // pred_fallthru
          _
        %s186 = sand.u32 %s29, 1
        %s187 = scalar_lea.sflag [#allocation3], %s186
        %s188 = sand.u32 %s29, 1
        %s189 = smul.addr %s188, 16
        %s190 = scalar_lea.vmem [#allocation2], %s189
        %p191 = pneg %p42
        %p192 = pneg %p39
        %p193 = pneg %p63
        %p194 = pneg %p60
        %p195 = pneg %p84
        %p196 = pneg %p81
        %p197 = pneg %p110
        %p198 = pneg %p107
        %s199 = sand.u32 %s97, 1
        %s200 = scalar_lea.sflag [#allocation4], %s199
        %s201 = sand.u32 %s97, 1
        %s202 = smul.addr %s201, 16
        %s203 = scalar_lea.vmem [#allocation7], %s202
        %s204 = smul.u32 2, %s21
        %s205 = smul.u32 2, %s21
        %v207 = vld [vmem:[%s177] sm:$0xff]
        %v208 = vld [vmem:[%s177 + $0x8] sm:$0xff]
        %v209 = vpack.c.bf16 %v208, %v207
        %v210 = vld [vmem:[#allocation5] sm:$0xf]
        %v211 = vld [vmem:[#allocation5 + $0x4] sm:$0xf]
        %v212 = vld [vmem:[#allocation5 + $0x8] sm:$0xf]
        %v213 = vld [vmem:[#allocation5 + $0xc] sm:$0xf]
        %v214 = vld [vmem:[#allocation5 + $0x10] sm:$0xf]
        %v215 = vld [vmem:[#allocation5 + $0x14] sm:$0xf]
        %v216 = vld [vmem:[#allocation5 + $0x18] sm:$0xf]
        %v217 = vld [vmem:[#allocation5 + $0x1c] sm:$0xf]
        %v218 = vld [vmem:[#allocation5 + $0x20] sm:$0xf]
        %v219 = vld [vmem:[#allocation5 + $0x24] sm:$0xf]
        %v220 = vld [vmem:[#allocation5 + $0x28] sm:$0xf]
        %v221 = vld [vmem:[#allocation5 + $0x2c] sm:$0xf]
        %v222 = vld [vmem:[#allocation5 + $0x30] sm:$0xf]
        %v223 = vld [vmem:[#allocation5 + $0x34] sm:$0xf]
        %v224 = vld [vmem:[#allocation5 + $0x38] sm:$0xf]
        %v225 = vld [vmem:[#allocation5 + $0x3c] sm:$0xf]
        %v226 = vld [vmem:[%s2] sm:$0x1]
        %v228 = vlaneseq
        %v229 = vshrl.u32 %v228, 7
        %v230 = vsub.s32 0, %v229
        %v231 = vrot.slane %v226, %v230
        %v249 = vunpack.c.l.b16 %v210
        %v250 = vunpack.c.l.b16 %v211
        %v251 = vunpack.c.l.b16 %v212
        %v252 = vunpack.c.l.b16 %v213
        %v253 = vunpack.c.l.b16 %v214
        %v254 = vunpack.c.l.b16 %v215
        %v255 = vunpack.c.l.b16 %v216
        %v256 = vunpack.c.l.b16 %v217
        %v257 = vunpack.c.l.b16 %v218
        %v258 = vunpack.c.l.b16 %v219
        %v259 = vunpack.c.l.b16 %v220
        %v260 = vunpack.c.l.b16 %v221
        %v261 = vunpack.c.l.b16 %v222
        %v262 = vunpack.c.l.b16 %v223
        %v263 = vunpack.c.l.b16 %v224
        %v264 = vunpack.c.l.b16 %v225
        %v265 = vpack.c.b16 %v250, %v249
        %v266 = vpack.c.b16 %v252, %v251
        %v267 = vpack.c.b16 %v254, %v253
        %v268 = vpack.c.b16 %v256, %v255
        %v269 = vpack.c.b16 %v258, %v257
        %v270 = vpack.c.b16 %v260, %v259
        %v271 = vpack.c.b16 %v262, %v261
        %v272 = vpack.c.b16 %v264, %v263
        %281 = vmatprep.subr.bf16.mxu0 0
        %282 = vmatpush1.bf16.msra.mxu0 %v265
        %283 = vmatprep.subr.bf16.mxu0 0
        %284 = vmatpush1.bf16.msra.mxu0 %v266
        %285 = vmatprep.subr.bf16.mxu0 0
        %286 = vmatpush1.bf16.msra.mxu0 %v267
        %287 = vmatprep.subr.bf16.mxu0 0
        %288 = vmatpush1.bf16.msra.mxu0 %v268
        %289 = vmatprep.subr.bf16.mxu0 0
        %290 = vmatpush1.bf16.msra.mxu0 %v269
        %291 = vmatprep.subr.bf16.mxu0 0
        %292 = vmatpush1.bf16.msra.mxu0 %v270
        %293 = vmatprep.subr.bf16.mxu0 0
        %294 = vmatpush1.bf16.msra.mxu0 %v271
        %295 = vmatprep.subr.bf16.mxu0 0
        %296 = vmatpush1.bf16.msra.mxu0 %v272
        %297 = vmatprep.subr.bf16.mxu0 0
        %298 = vmatpush1.bf16.msra.mxu0 0
        %299 = vmatprep.subr.bf16.mxu0 0
        %300 = vmatpush1.bf16.msra.mxu0 0
        %301 = vmatprep.subr.bf16.mxu0 0
        %302 = vmatpush1.bf16.msra.mxu0 0
        %303 = vmatprep.subr.bf16.mxu0 0
        %304 = vmatpush1.bf16.msra.mxu0 0
        %305 = vmatprep.subr.bf16.mxu0 0
        %306 = vmatpush1.bf16.msra.mxu0 0
        %307 = vmatprep.subr.bf16.mxu0 0
        %308 = vmatpush1.bf16.msra.mxu0 0
        %309 = vmatprep.subr.bf16.mxu0 0
        %310 = vmatpush1.bf16.msra.mxu0 0
        %311 = vmatprep.subr.bf16.mxu0 0
        %312 = vmatpush1.bf16.msra.mxu0 0
        %313 = vmatprep.mubr.bf16.mxu0 0
        %314 = vmatmul.mubr.bf16.gmra.mrb[0].mxu0 %v209
        %v315 = vpop.f32.mrb[0].mxu0
        %v316 = vadd.f32 %v231, %v315
        %v317 = vpop.f32.mrb[0].mxu0
        %v318 = vpop.f32.mrb[0].mxu0
        %v319 = vadd.f32 %v231, %v318
        %v320 = vpop.f32.mrb[0].mxu0
        %321 = vdwg.mxu0
        %v322 = vmul.f32 %v207, %v316
        %v323 = vmul.f32 %v208, %v319
        %v324 = vadd.f32 %v322, %v207
        %v325 = vadd.f32 %v323, %v208
        %v326 = vpack.c.bf16 %v325, %v324
        %s327 = scalar_lea.vmem [#allocation5], 64
        %v328 = vld [vmem:[%s327] sm:$0xf]
        %v329 = vld [vmem:[%s327 + $0x4] sm:$0xf]
        %v330 = vld [vmem:[%s327 + $0x8] sm:$0xf]
        %v331 = vld [vmem:[%s327 + $0xc] sm:$0xf]
        %v332 = vld [vmem:[%s327 + $0x10] sm:$0xf]
        %v333 = vld [vmem:[%s327 + $0x14] sm:$0xf]
        %v334 = vld [vmem:[%s327 + $0x18] sm:$0xf]
        %v335 = vld [vmem:[%s327 + $0x1c] sm:$0xf]
        %v336 = vld [vmem:[%s327 + $0x20] sm:$0xf]
        %v337 = vld [vmem:[%s327 + $0x24] sm:$0xf]
        %v338 = vld [vmem:[%s327 + $0x28] sm:$0xf]
        %v339 = vld [vmem:[%s327 + $0x2c] sm:$0xf]
        %v340 = vld [vmem:[%s327 + $0x30] sm:$0xf]
        %v341 = vld [vmem:[%s327 + $0x34] sm:$0xf]
        %v342 = vld [vmem:[%s327 + $0x38] sm:$0xf]
        %v343 = vld [vmem:[%s327 + $0x3c] sm:$0xf]
        %s344 = scalar_lea.vmem %s2, 1
        %v345 = vld [vmem:[%s344] sm:$0x1]
        %v347 = vlaneseq
        %v348 = vshrl.u32 %v347, 7
        %v349 = vsub.s32 0, %v348
        %v350 = vrot.slane %v345, %v349
        %v368 = vunpack.c.l.b16 %v328
        %v369 = vunpack.c.l.b16 %v329
        %v370 = vunpack.c.l.b16 %v330
        %v371 = vunpack.c.l.b16 %v331
        %v372 = vunpack.c.l.b16 %v332
        %v373 = vunpack.c.l.b16 %v333
        %v374 = vunpack.c.l.b16 %v334
        %v375 = vunpack.c.l.b16 %v335
        %v376 = vunpack.c.l.b16 %v336
        %v377 = vunpack.c.l.b16 %v337
        %v378 = vunpack.c.l.b16 %v338
        %v379 = vunpack.c.l.b16 %v339
        %v380 = vunpack.c.l.b16 %v340
        %v381 = vunpack.c.l.b16 %v341
        %v382 = vunpack.c.l.b16 %v342
        %v383 = vunpack.c.l.b16 %v343
        %v384 = vpack.c.b16 %v369, %v368
        %v385 = vpack.c.b16 %v371, %v370
        %v386 = vpack.c.b16 %v373, %v372
        %v387 = vpack.c.b16 %v375, %v374
        %v388 = vpack.c.b16 %v377, %v376
        %v389 = vpack.c.b16 %v379, %v378
        %v390 = vpack.c.b16 %v381, %v380
        %v391 = vpack.c.b16 %v383, %v382
        %400 = vmatprep.subr.bf16.mxu0 0
        %401 = vmatpush1.bf16.msra.mxu0 %v384
        %402 = vmatprep.subr.bf16.mxu0 0
        %403 = vmatpush1.bf16.msra.mxu0 %v385
        %404 = vmatprep.subr.bf16.mxu0 0
        %405 = vmatpush1.bf16.msra.mxu0 %v386
        %406 = vmatprep.subr.bf16.mxu0 0
        %407 = vmatpush1.bf16.msra.mxu0 %v387
        %408 = vmatprep.subr.bf16.mxu0 0
        %409 = vmatpush1.bf16.msra.mxu0 %v388
        %410 = vmatprep.subr.bf16.mxu0 0
        %411 = vmatpush1.bf16.msra.mxu0 %v389
        %412 = vmatprep.subr.bf16.mxu0 0
        %413 = vmatpush1.bf16.msra.mxu0 %v390
        %414 = vmatprep.subr.bf16.mxu0 0
        %415 = vmatpush1.bf16.msra.mxu0 %v391
        %416 = vmatprep.subr.bf16.mxu0 0
        %417 = vmatpush1.bf16.msra.mxu0 0
        %418 = vmatprep.subr.bf16.mxu0 0
        %419 = vmatpush1.bf16.msra.mxu0 0
        %420 = vmatprep.subr.bf16.mxu0 0
        %421 = vmatpush1.bf16.msra.mxu0 0
        %422 = vmatprep.subr.bf16.mxu0 0
        %423 = vmatpush1.bf16.msra.mxu0 0
        %424 = vmatprep.subr.bf16.mxu0 0
        %425 = vmatpush1.bf16.msra.mxu0 0
        %426 = vmatprep.subr.bf16.mxu0 0
        %427 = vmatpush1.bf16.msra.mxu0 0
        %428 = vmatprep.subr.bf16.mxu0 0
        %429 = vmatpush1.bf16.msra.mxu0 0
        %430 = vmatprep.subr.bf16.mxu0 0
        %431 = vmatpush1.bf16.msra.mxu0 0
        %432 = vmatprep.mubr.bf16.mxu0 0
        %433 = vmatmul.mubr.bf16.gmra.mrb[0].mxu0 %v326
        %v434 = vpop.f32.mrb[0].mxu0
        %v435 = vadd.f32 %v350, %v434
        %v436 = vpop.f32.mrb[0].mxu0
        %v437 = vpop.f32.mrb[0].mxu0
        %v438 = vadd.f32 %v350, %v437
        %v439 = vpop.f32.mrb[0].mxu0
        %440 = vdwg.mxu0
        %v441 = vmul.f32 %v207, %v435
        %v442 = vmul.f32 %v208, %v438
        %v443 = vadd.f32 %v441, %v324
        %v444 = vadd.f32 %v442, %v325
        %v445 = vpack.c.bf16 %v444, %v443
        %s446 = scalar_lea.vmem [#allocation5], 128
        %v447 = vld [vmem:[%s446] sm:$0xf]
        %v448 = vld [vmem:[%s446 + $0x4] sm:$0xf]
        %v449 = vld [vmem:[%s446 + $0x8] sm:$0xf]
        %v450 = vld [vmem:[%s446 + $0xc] sm:$0xf]
        %v451 = vld [vmem:[%s446 + $0x10] sm:$0xf]
        %v452 = vld [vmem:[%s446 + $0x14] sm:$0xf]
        %v453 = vld [vmem:[%s446 + $0x18] sm:$0xf]
        %v454 = vld [vmem:[%s446 + $0x1c] sm:$0xf]
        %v455 = vld [vmem:[%s446 + $0x20] sm:$0xf]
        %v456 = vld [vmem:[%s446 + $0x24] sm:$0xf]
        %v457 = vld [vmem:[%s446 + $0x28] sm:$0xf]
        %v458 = vld [vmem:[%s446 + $0x2c] sm:$0xf]
        %v459 = vld [vmem:[%s446 + $0x30] sm:$0xf]
        %v460 = vld [vmem:[%s446 + $0x34] sm:$0xf]
        %v461 = vld [vmem:[%s446 + $0x38] sm:$0xf]
        %v462 = vld [vmem:[%s446 + $0x3c] sm:$0xf]
        %s463 = scalar_lea.vmem %s2, 2
        %v464 = vld [vmem:[%s463] sm:$0x1]
        %v466 = vlaneseq
        %v467 = vshrl.u32 %v466, 7
        %v468 = vsub.s32 0, %v467
        %v469 = vrot.slane %v464, %v468
        %v487 = vunpack.c.l.b16 %v447
        %v488 = vunpack.c.l.b16 %v448
        %v489 = vunpack.c.l.b16 %v449
        %v490 = vunpack.c.l.b16 %v450
        %v491 = vunpack.c.l.b16 %v451
        %v492 = vunpack.c.l.b16 %v452
        %v493 = vunpack.c.l.b16 %v453
        %v494 = vunpack.c.l.b16 %v454
        %v495 = vunpack.c.l.b16 %v455
        %v496 = vunpack.c.l.b16 %v456
        %v497 = vunpack.c.l.b16 %v457
        %v498 = vunpack.c.l.b16 %v458
        %v499 = vunpack.c.l.b16 %v459
        %v500 = vunpack.c.l.b16 %v460
        %v501 = vunpack.c.l.b16 %v461
        %v502 = vunpack.c.l.b16 %v462
        %v503 = vpack.c.b16 %v488, %v487
        %v504 = vpack.c.b16 %v490, %v489
        %v505 = vpack.c.b16 %v492, %v491
        %v506 = vpack.c.b16 %v494, %v493
        %v507 = vpack.c.b16 %v496, %v495
        %v508 = vpack.c.b16 %v498, %v497
        %v509 = vpack.c.b16 %v500, %v499
        %v510 = vpack.c.b16 %v502, %v501
        %519 = vmatprep.subr.bf16.mxu0 0
        %520 = vmatpush1.bf16.msra.mxu0 %v503
        %521 = vmatprep.subr.bf16.mxu0 0
        %522 = vmatpush1.bf16.msra.mxu0 %v504
        %523 = vmatprep.subr.bf16.mxu0 0
        %524 = vmatpush1.bf16.msra.mxu0 %v505
        %525 = vmatprep.subr.bf16.mxu0 0
        %526 = vmatpush1.bf16.msra.mxu0 %v506
        %527 = vmatprep.subr.bf16.mxu0 0
        %528 = vmatpush1.bf16.msra.mxu0 %v507
        %529 = vmatprep.subr.bf16.mxu0 0
        %530 = vmatpush1.bf16.msra.mxu0 %v508
        %531 = vmatprep.subr.bf16.mxu0 0
        %532 = vmatpush1.bf16.msra.mxu0 %v509
        %533 = vmatprep.subr.bf16.mxu0 0
        %534 = vmatpush1.bf16.msra.mxu0 %v510
        %535 = vmatprep.subr.bf16.mxu0 0
        %536 = vmatpush1.bf16.msra.mxu0 0
        %537 = vmatprep.subr.bf16.mxu0 0
        %538 = vmatpush1.bf16.msra.mxu0 0
        %539 = vmatprep.subr.bf16.mxu0 0
        %540 = vmatpush1.bf16.msra.mxu0 0
        %541 = vmatprep.subr.bf16.mxu0 0
        %542 = vmatpush1.bf16.msra.mxu0 0
        %543 = vmatprep.subr.bf16.mxu0 0
        %544 = vmatpush1.bf16.msra.mxu0 0
        %545 = vmatprep.subr.bf16.mxu0 0
        %546 = vmatpush1.bf16.msra.mxu0 0
        %547 = vmatprep.subr.bf16.mxu0 0
        %548 = vmatpush1.bf16.msra.mxu0 0
        %549 = vmatprep.subr.bf16.mxu0 0
        %550 = vmatpush1.bf16.msra.mxu0 0
        %551 = vmatprep.mubr.bf16.mxu0 0
        %552 = vmatmul.mubr.bf16.gmra.mrb[0].mxu0 %v445
        %v553 = vpop.f32.mrb[0].mxu0
        %v554 = vadd.f32 %v469, %v553
        %v555 = vpop.f32.mrb[0].mxu0
        %v556 = vpop.f32.mrb[0].mxu0
        %v557 = vadd.f32 %v469, %v556
        %v558 = vpop.f32.mrb[0].mxu0
        %559 = vdwg.mxu0
        %v560 = vmul.f32 %v207, %v554
        %v561 = vmul.f32 %v208, %v557
        %v562 = vadd.f32 %v560, %v443
        %v563 = vadd.f32 %v561, %v444
        %564 = vst [vmem:[%s203] sm:$0xff] %v562
        %565 = vst [vmem:[%s203 + $0x8] sm:$0xff] %v563
        %s566 = sand.u32 %s97, 1
        %s567 = scalar_lea.sflag [#allocation4], %s566
        %s568 = sand.u32 %s97, 1
        %s569 = smul.addr %s568, 16
        %s570 = scalar_lea.vmem [#allocation7], %s569
        // Predicated region
        $region41: #{tpu_custom_call.1} parent=31 // pred_check
          %p571 = pneg %p107
        $region42: #{tpu_custom_call.1} parent=31 // pred_check_branch
          %573 = sbr.rel (%p571) target = $region44
        $region43: #{tpu_custom_call.1} parent=31 // pred_region
          %s574 = smul.u32 2, %s21
          %s576 = ssub.s32 256, 256
          %577 = vsyncadd %s567, %s576
          %s578 = smul.addr %s574, 128
          %s579 = scalar_lea.hbm %s3, %s578
          %s580 = sshll.u32 %s570, 4
          %s581 = int_to_ptr.vmem [resolvable:$true] %s580
          %586 = dma.vmem_to_hbm [thread:$0]  %s581, 256, %s579, %s567, 128, 128, 8
        $region44: #{tpu_custom_call.1} parent=31 // pred_fallthru
          _
      $region32: #{tpu_custom_call.1} parent=5 // pred_fallthru
        _
      %p587 = scmp.le.s32.totalorder 2, %s16
      // Predicated region
      $region45: #{tpu_custom_call.1} parent=5 // pred_check
        %p588 = pneg %p587
      $region46: #{tpu_custom_call.1} parent=5 // pred_check_branch
        %590 = sbr.rel (%p588) target = $region48
      $region47: #{tpu_custom_call.1} parent=5 // pred_region
        %s591 = ssub.s32 %s16, 2
        // Predicated region
        $region49: #{tpu_custom_call.1} parent=47 // pred_check
          %p592 = pneg %p113
        $region50: #{tpu_custom_call.1} parent=47 // pred_check_branch
          %594 = sbr.rel (%p592) target = $region52
        $region51: #{tpu_custom_call.1} parent=47 // pred_region
          %s595 = sand.u32 %s98, 1
          %s596 = scalar_lea.sflag [#allocation4], %s595
          %s597 = sand.u32 %s98, 1
          %s598 = smul.addr %s597, 16
          %s599 = scalar_lea.vmem [#allocation7], %s598
          %600 = dma.done %s596, 256
        $region52: #{tpu_custom_call.1} parent=47 // pred_fallthru
          _
      $region48: #{tpu_custom_call.1} parent=5 // pred_fallthru
        _
    $region6: #{tpu_custom_call.1} parent=1 // loop_footer
      %s20 = sadd.s32 1, %s16
    $region7: #{tpu_custom_call.1} parent=1 // loop_footer_branch
      %15 = sbr.rel target = $region3
    $region8: #{tpu_custom_call.1} parent=1 // loop_exit
      _
    %601 = vsyncpa [#allocation3], 1
    %s602 = scalar_lea.sflag [#allocation3], 1
    %603 = vsyncpa %s602, 1
    %604 = vsyncpa [#allocation6], 1
    %605 = vsyncpa [#allocation4], 1
    %s606 = scalar_lea.sflag [#allocation4], 1
    %607 = vsyncpa %s606, 1

</llo_original>
